<compile_context>
chip_gen: v7x
topology: tpu7x:2x2x1
jax: 0.10.0
libtpu: 0.0.40
codegen_flags: <defaults>
</compile_context>

<pallas_src>
import jax
import jax.numpy as jnp
from jax.experimental import pallas as pl
from jax.experimental.pallas import tpu as pltpu


def _transpose12_kernel(x_ref, o_ref):
    # x_ref: (Bt, tl, td) tile; o_ref: (Bt, td, tl) tile.
    # The swap of the last two (sublane/lane) dims is done on-chip (XLU).
    o_ref[...] = jnp.swapaxes(x_ref[...], 1, 2)


def _pick_tile(full, target=512, align=128):
    """Tile length: full extent if the axis is short, else a 128-aligned chunk.

    512 is a multiple of both 8 and 128, so the same tile length is legal as
    either the sublane or the lane dimension of a block; a full-extent block
    is always legal regardless of alignment.
    """
    if full <= target:
        return full
    return max((target // align) * align, align)


def transpose_pallas(x, dims=(1, 2), contiguous=False):
    """Pallas equivalent of Transpose(*dims)(x) for a 3-D input with dims=(1, 2)."""
    assert x.ndim == 3, "kernel implemented for 3-D (B, L, D) inputs"
    assert tuple(sorted(dims)) == (1, 2), "kernel implemented for dims=(1, 2)"
    del contiguous  # Pallas output is always freshly materialized (contiguous).

    B, L, D = x.shape
    itemsize = jnp.dtype(x.dtype).itemsize

    # ---- tile selection --------------------------------------------------
    # tl is the sublane dim of the input block and the lane dim of the output
    # block; td is the opposite.  Capping both at 512 keeps every block
    # lane-dense (multiple of 128) for large shapes and shape-robust for
    # small/odd ones (full-extent blocks).
    tl = _pick_tile(L)
    td = _pick_tile(D)

    # Fold several batch elements into one grid step so each DMA moves a
    # ~2 MiB slab; tiny per-step blocks waste HBM bandwidth on the ~0.35 us
    # per-step overhead.  2 input + 2 output double-buffers of <= 2 MiB each
    # stay well under the 16 MiB (v5e) / 32 MiB (v6e, v7x) default scoped
    # VMEM budgets and under v7x's 64 MiB physical VMEM.
    target_block_bytes = 2 * 1024 * 1024
    per_batch_bytes = tl * td * itemsize
    bt = int(max(1, min(B, target_block_bytes // per_batch_bytes)))

    grid = (pl.cdiv(B, bt), pl.cdiv(L, tl), pl.cdiv(D, td))
    out_shape = jax.ShapeDtypeStruct((B, D, L), x.dtype)

    return pl.pallas_call(
        _transpose12_kernel,
        out_shape=out_shape,
        grid_spec=pltpu.PrefetchScalarGridSpec(
            num_scalar_prefetch=0,
            grid=grid,
            in_specs=[pl.BlockSpec((bt, tl, td), lambda b, i, j: (b, i, j))],
            out_specs=pl.BlockSpec((bt, td, tl), lambda b, i, j: (b, j, i)),
        ),
        compiler_params=pltpu.CompilerParams(
            # Every output block is written exactly once -> fully parallel grid
            # (lets megacore / v7x's two TensorCores shard all axes).
            dimension_semantics=("parallel", "parallel", "parallel"),
        ),
        cost_estimate=pl.CostEstimate(
            flops=0,
            transcendentals=0,
            bytes_accessed=2 * B * L * D * itemsize,
        ),
    )(x)


if __name__ == "__main__":
    key = jax.random.PRNGKey(0)
    k0, k1 = jax.random.split(key)

    # Small shapes consistent with PatchTST usage: (batch, seq, d_model).
    B, L, D = 2, 8, 32
    x = jax.random.normal(k0, (B, L, D), dtype=jnp.float32)
    y = jax.block_until_ready(transpose_pallas(x, dims=(1, 2), contiguous=True))
    y_ref = jnp.swapaxes(x, 1, 2)
    assert y.shape == (B, D, L)
    assert y.dtype == x.dtype
    assert jnp.array_equal(y, y_ref)

    # A second, larger shape that exercises batch folding and (L, D) tiling,
    # including a partial tile along L (640 = 512 + 128).
    B2, L2, D2 = 3, 640, 160
    x2 = jax.random.normal(k1, (B2, L2, D2), dtype=jnp.float32)
    y2 = jax.block_until_ready(transpose_pallas(x2))
    assert jnp.array_equal(y2, jnp.swapaxes(x2, 1, 2))

    print("KERNEL_OK")
</pallas_src>

<mosaic_0001>
module attributes {stable_mosaic.version = 11 : i64} {
  func.func @_transpose12_kernel(%arg0: i32, %arg1: i32, %arg2: i32, %arg3: memref<2x8x32xf32, #tpu.memory_space<vmem>>, %arg4: memref<2x32x8xf32, #tpu.memory_space<vmem>>) attributes {dimension_semantics = [#tpu.dimension_semantics<parallel>, #tpu.dimension_semantics<parallel>, #tpu.dimension_semantics<parallel>], iteration_bounds = array<i64: 1, 1, 1>, scalar_prefetch = 0 : i64, scratch_operands = 0 : i64, tpu.core_type = #tpu.core_type<tc>, window_params = [{transform_indices = @transform_0, window_bounds = array<i64: 2, 8, 32>}, {transform_indices = @transform_1, window_bounds = array<i64: 2, 32, 8>}]} {
    %c0 = arith.constant 0 : index
    %c0_0 = arith.constant 0 : index
    %c0_1 = arith.constant 0 : index
    %0 = vector.load %arg3[%c0, %c0_0, %c0_1] : memref<2x8x32xf32, #tpu.memory_space<vmem>>, vector<2x8x32xf32>
    %1 = tpu.transpose %0, [0, 2, 1] : vector<2x8x32xf32> -> vector<2x32x8xf32>
    %c0_2 = arith.constant 0 : index
    %c0_3 = arith.constant 0 : index
    %c0_4 = arith.constant 0 : index
    %2 = vector.load %arg4[%c0_2, %c0_3, %c0_4] : memref<2x32x8xf32, #tpu.memory_space<vmem>>, vector<2x32x8xf32>
    tpu.vector_store %arg4[%c0_2, %c0_3, %c0_4], %1 {strides = array<i32>} : memref<2x32x8xf32, #tpu.memory_space<vmem>>, vector<2x32x8xf32>,
    return
  }
  func.func @transform_0(%arg0: i32, %arg1: i32, %arg2: i32) -> (i32, i32, i32) {
    %c0_i32 = arith.constant 0 : i32
    return %arg0, %arg1, %arg2 : i32, i32, i32
  }
  func.func @transform_1(%arg0: i32, %arg1: i32, %arg2: i32) -> (i32, i32, i32) {
    %c0_i32 = arith.constant 0 : i32
    return %arg0, %arg2, %arg1 : i32, i32, i32
  }
}

</mosaic_0001>

<llo_original>
// kernel: tpu_custom_call.1
$region0: #{tpu_custom_call.1}
  #allocation0 [shape = 'u32[]', space=smem, size = 0x4, offset = 0x4, fixed_abs, tag = 'smem constant byte address 0x4 - core index']
  #allocation1 [shape = 'u32[144,128]{1,0:T(1,128)}', space=vmem, size = 0x12000, scoped, tag = 'internal scratch']
  %s0 = inlined_call_operand.hbm [shape: f32[2,8,32], index: 0, kind: input, shape index: {}]
  %s1 = inlined_call_operand.vmem [shape: f32[2,32,8], index: 1, kind: output, shape index: {}]
  %s2 = sld [smem:[#allocation0]]
  $region18: #{tpu_custom_call.1} parent=0
    _
  %s4 = ssub.s32 1, %s2
  %s5 = scalar_select 0, %s4, %s2
  $region1: #{tpu_custom_call.1} parent=0
    #allocation2 [shape = 'u8[8192]{0}', space=vmem, size = 0x2000, scoped, tag = 'input window, operand 0, single buffered']
    #allocation3 [shape = 's32[1]{0}', space=sflag, size = 0x4, scoped, tag = 'scoped memory for tpu_custom_call.1']
    %6 = vsyncpa [#allocation3], 0
    // Predicated region
    $region2: #{tpu_custom_call.1} parent=1 // pred_check
      _
    $region3: #{tpu_custom_call.1} parent=1 // pred_check_branch
      %8 = sbr.rel (0) target = $region5
    $region4: #{tpu_custom_call.1} parent=1 // pred_region
      %s10 = ssub.s32 256, 256
      %11 = vsyncadd [#allocation3], %s10
      %s12 = sshll.u32 [#allocation2], 4
      %s13 = int_to_ptr.vmem [resolvable:$true] %s12
      %18 = dma.hbm_to_vmem [thread:$0]  %s0, 256, %s13, [#allocation3], 128, 128, 8
    $region5: #{tpu_custom_call.1} parent=1 // pred_fallthru
      _
    // Predicated region
    $region6: #{tpu_custom_call.1} parent=1 // pred_check
      _
    $region7: #{tpu_custom_call.1} parent=1 // pred_check_branch
      %20 = sbr.rel (0) target = $region9
    $region8: #{tpu_custom_call.1} parent=1 // pred_region
      %21 = dma.done [#allocation3], 256
    $region9: #{tpu_custom_call.1} parent=1 // pred_fallthru
      _
    %v22 = vld [vmem:[#allocation2] sm:$0xff]
    %v23 = vld [vmem:[#allocation2 + $0x8] sm:$0xff]
    %24 = vxpose.xlu0.b32.start [1/16] %v22, 128
    %25 = vxpose.xlu0.b32.cont [2/16] 0.0, 128
    %26 = vxpose.xlu0.b32.cont [3/16] 0.0, 128
    %27 = vxpose.xlu0.b32.cont [4/16] 0.0, 128
    %28 = vxpose.xlu0.b32.cont [5/16] 0.0, 128
    %29 = vxpose.xlu0.b32.cont [6/16] 0.0, 128
    %30 = vxpose.xlu0.b32.cont [7/16] 0.0, 128
    %31 = vxpose.xlu0.b32.cont [8/16] 0.0, 128
    %32 = vxpose.xlu0.b32.cont [9/16] 0.0, 128
    %33 = vxpose.xlu0.b32.cont [10/16] 0.0, 128
    %34 = vxpose.xlu0.b32.cont [11/16] 0.0, 128
    %35 = vxpose.xlu0.b32.cont [12/16] 0.0, 128
    %36 = vxpose.xlu0.b32.cont [13/16] 0.0, 128
    %37 = vxpose.xlu0.b32.cont [14/16] 0.0, 128
    %38 = vxpose.xlu0.b32.cont [15/16] 0.0, 128
    %39 = vxpose.xlu0.b32.end [16/16] 0.0, 128
    %v40 = vpop.trf.xlu0
    %v41 = vpop.trf.xlu0
    %v42 = vpop.trf.xlu0
    %v43 = vpop.trf.xlu0
    %v44 = vpop.trf.xlu0
    %v45 = vpop.trf.xlu0
    %v46 = vpop.trf.xlu0
    %v47 = vpop.trf.xlu0
    %v48 = vpop.trf.xlu0
    %v49 = vpop.trf.xlu0
    %v50 = vpop.trf.xlu0
    %v51 = vpop.trf.xlu0
    %v52 = vpop.trf.xlu0
    %v53 = vpop.trf.xlu0
    %v54 = vpop.trf.xlu0
    %v55 = vpop.trf.xlu0
    %56 = vxpose.xlu0.b32.start [1/16] %v23, 128
    %57 = vxpose.xlu0.b32.cont [2/16] 0.0, 128
    %58 = vxpose.xlu0.b32.cont [3/16] 0.0, 128
    %59 = vxpose.xlu0.b32.cont [4/16] 0.0, 128
    %60 = vxpose.xlu0.b32.cont [5/16] 0.0, 128
    %61 = vxpose.xlu0.b32.cont [6/16] 0.0, 128
    %62 = vxpose.xlu0.b32.cont [7/16] 0.0, 128
    %63 = vxpose.xlu0.b32.cont [8/16] 0.0, 128
    %64 = vxpose.xlu0.b32.cont [9/16] 0.0, 128
    %65 = vxpose.xlu0.b32.cont [10/16] 0.0, 128
    %66 = vxpose.xlu0.b32.cont [11/16] 0.0, 128
    %67 = vxpose.xlu0.b32.cont [12/16] 0.0, 128
    %68 = vxpose.xlu0.b32.cont [13/16] 0.0, 128
    %69 = vxpose.xlu0.b32.cont [14/16] 0.0, 128
    %70 = vxpose.xlu0.b32.cont [15/16] 0.0, 128
    %71 = vxpose.xlu0.b32.end [16/16] 0.0, 128
    %v72 = vpop.trf.xlu0
    %v73 = vpop.trf.xlu0
    %v74 = vpop.trf.xlu0
    %v75 = vpop.trf.xlu0
    %v76 = vpop.trf.xlu0
    %v77 = vpop.trf.xlu0
    %v78 = vpop.trf.xlu0
    %v79 = vpop.trf.xlu0
    %v80 = vpop.trf.xlu0
    %v81 = vpop.trf.xlu0
    %v82 = vpop.trf.xlu0
    %v83 = vpop.trf.xlu0
    %v84 = vpop.trf.xlu0
    %v85 = vpop.trf.xlu0
    %v86 = vpop.trf.xlu0
    %v87 = vpop.trf.xlu0
    %vm88 = vcmask 64512
    %89 = vst.msk [vmem:[%s1] sm:$0xff] %vm88, %v40
    %90 = vst.msk [vmem:[%s1 + $0x8] sm:$0xff] %vm88, %v41
    %91 = vst.msk [vmem:[%s1 + $0x10] sm:$0xff] %vm88, %v42
    %92 = vst.msk [vmem:[%s1 + $0x18] sm:$0xff] %vm88, %v43
    %93 = vst.msk [vmem:[%s1 + $0x20] sm:$0xff] %vm88, %v72
    %94 = vst.msk [vmem:[%s1 + $0x28] sm:$0xff] %vm88, %v73
    %95 = vst.msk [vmem:[%s1 + $0x30] sm:$0xff] %vm88, %v74
    %96 = vst.msk [vmem:[%s1 + $0x38] sm:$0xff] %vm88, %v75
    // Predicated region
    $region10: #{tpu_custom_call.1} parent=1 // pred_check
      _
    $region11: #{tpu_custom_call.1} parent=1 // pred_check_branch
      %98 = sbr.rel (0) target = $region13
    $region12: #{tpu_custom_call.1} parent=1 // pred_region
      _
    $region13: #{tpu_custom_call.1} parent=1 // pred_fallthru
      _
    // Predicated region
    $region14: #{tpu_custom_call.1} parent=1 // pred_check
      _
    $region15: #{tpu_custom_call.1} parent=1 // pred_check_branch
      %100 = sbr.rel (0) target = $region17
    $region16: #{tpu_custom_call.1} parent=1 // pred_region
      _
    $region17: #{tpu_custom_call.1} parent=1 // pred_fallthru
      _
    %101 = vsyncpa [#allocation3], 1

</llo_original>
